<compile_context>
chip_gen: v6e
topology: v6e:2x2x1
jax: 0.10.0
libtpu: 0.0.40
codegen_flags: <defaults>
</compile_context>

<pallas_src>
import math

import jax
import jax.numpy as jnp
from jax.experimental import pallas as pl
from jax.experimental.pallas import tpu as pltpu

# ----------------------------- configuration ------------------------------
SEQ = 8
BATCH = 2
HIDDEN = 32
MULTIPLE_OF = 256
FF_DIM = MULTIPLE_OF * ((int(2 * HIDDEN * 4 / 3) + MULTIPLE_OF - 1) // MULTIPLE_OF)  # 256
LANE = 128          # TPU lane width: hidden dim is zero-padded to this for dense stores
ROW_TILE = 16       # == SEQ*BATCH -> single grid step; multiple of 16 for bf16 packing


# ------------------------------ Pallas kernel ------------------------------
def _llama_mlp_kernel(x_ref, wgu_ref, wd_ref, o_ref):
    """One row-tile of the fused LLaMA MLP: o = (silu(x@Wg) * (x@Wu)) @ Wd.

    x_ref  : [tm, Hp]      bf16   (Hp = hidden zero-padded to a lane multiple)
    wgu_ref: [Hp, 2*FF]    bf16   (gate and up weights concatenated along N)
    wd_ref : [FF, Hp]      bf16   (down weights, N zero-padded)
    o_ref  : [tm, Hp]      f32
    """
    x = x_ref[...]                                                     # [tm, Hp] bf16
    # Fused gate+up projection: one MXU weight-push stream, f32 accumulation.
    gu = jnp.dot(x, wgu_ref[...], preferred_element_type=jnp.float32)  # [tm, 2*FF] f32
    ff = gu.shape[1] // 2
    g = gu[:, :ff]                                                     # lane-tile aligned slice
    u = gu[:, ff:]
    # SiLU(gate) * up in f32 (EUP sigmoid + VPU muls; v5e-safe, no bf16 elementwise).
    h = g * jax.nn.sigmoid(g) * u                                      # [tm, FF] f32
    # Down projection: bf16 into the MXU (intentional rounding), f32 accumulation.
    o = jnp.dot(h.astype(jnp.bfloat16), wd_ref[...],
                preferred_element_type=jnp.float32)                    # [tm, Hp] f32
    o_ref[...] = o.astype(o_ref.dtype)


# ----------------------- one-time weight preparation ------------------------
def prepare_mlp_weights(wg, wu, wd, lane=LANE):
    """Cast-once + gate/up fusion + lane padding. Call ONCE at init, outside jit.

    wg, wu: [H, FF] f32;  wd: [FF, H] f32
    Returns (wgu_bf16 [Hp, 2*FF], wd_bf16 [FF, Hp]) with Hp = H rounded up to `lane`.
    Zero K-padding of wgu rows and zero N-padding of wd cols are exact no-ops numerically.
    """
    h, ff = wg.shape
    hp = -(-h // lane) * lane
    wgu = jnp.concatenate([wg, wu], axis=1)                 # [H, 2*FF]
    wgu = jnp.pad(wgu, ((0, hp - h), (0, 0)))               # [Hp, 2*FF]
    wdp = jnp.pad(wd, ((0, 0), (0, hp - h)))                # [FF, Hp]
    return wgu.astype(jnp.bfloat16), wdp.astype(jnp.bfloat16)


# --------------------------------- wrapper ----------------------------------
def llama_parallel_mlp(hidden_states, wgu_b, wd_b, *, row_tile=ROW_TILE):
    """hidden_states: [seq, batch, hidden] -> [seq, batch, hidden] (fused LLaMA MLP)."""
    s, b, h = hidden_states.shape
    n = s * b
    hp, ff2 = wgu_b.shape                                    # padded hidden, 2*FF
    ff = ff2 // 2

    # Flatten rows, cast activations to bf16 for the MXU, lane-pad hidden (no-op if h==hp).
    x2d = hidden_states.reshape(n, h).astype(jnp.bfloat16)
    if hp != h:
        x2d = jnp.pad(x2d, ((0, 0), (0, hp - h)))
    # Pad rows to a multiple of the row tile so no grid step sees unspecified data.
    n_pad = pl.cdiv(n, row_tile) * row_tile
    if n_pad != n:
        x2d = jnp.pad(x2d, ((0, n_pad - n), (0, 0)))

    grid = (n_pad // row_tile,)                              # == (1,) at these toy dims

    out = pl.pallas_call(
        _llama_mlp_kernel,
        out_shape=jax.ShapeDtypeStruct((n_pad, hp), jnp.float32),
        grid=grid,
        in_specs=[
            pl.BlockSpec((row_tile, hp), lambda i: (i, 0)),  # activations: tile rows
            pl.BlockSpec((hp, ff2), lambda i: (0, 0)),       # fused gate+up weight: resident
            pl.BlockSpec((ff, hp), lambda i: (0, 0)),        # down weight: resident
        ],
        out_specs=pl.BlockSpec((row_tile, hp), lambda i: (i, 0)),  # 128-lane dense stores
        compiler_params=pltpu.CompilerParams(
            dimension_semantics=("parallel",),               # shards row tiles on v7x 2 TCs
            vmem_limit_bytes=32 * 1024 * 1024,               # safe on 64 MiB (v7x) and 128 MiB
        ),
    )(x2d, wgu_b, wd_b)

    return out[:n, :h].reshape(s, b, h).astype(hidden_states.dtype)


# --------------------------- pure-JAX f32 reference --------------------------
def reference_mlp(hidden_states, wg, wu, wd):
    g = hidden_states @ wg
    u = hidden_states @ wu
    return (g * jax.nn.sigmoid(g) * u) @ wd


# ----------------------------------- main ------------------------------------
def init_params(key):
    kg, ku, kd = jax.random.split(key, 3)

    def xavier(k, shape):
        fan_in, fan_out = shape
        std = math.sqrt(2.0 / (fan_in + fan_out))
        return jax.random.normal(k, shape, jnp.float32) * std

    return (xavier(kg, (HIDDEN, FF_DIM)),
            xavier(ku, (HIDDEN, FF_DIM)),
            xavier(kd, (FF_DIM, HIDDEN)))


if __name__ == "__main__":
    key = jax.random.PRNGKey(0)
    k_x, k_p = jax.random.split(key)
    wg, wu, wd = init_params(k_p)
    x = jax.random.normal(k_x, (SEQ, BATCH, HIDDEN), jnp.float32)   # [seq, batch, hidden]

    # Weight prep (bf16 cast, gate/up fusion, lane padding) happens ONCE, outside the jit.
    wgu_b, wd_b = prepare_mlp_weights(wg, wu, wd)
    wgu_b, wd_b = jax.block_until_ready((wgu_b, wd_b))

    fwd = jax.jit(llama_parallel_mlp)
    out = fwd(x, wgu_b, wd_b)
    out = jax.block_until_ready(out)

    ref = reference_mlp(x, wg, wu, wd)
    assert out.shape == (SEQ, BATCH, HIDDEN)
    # bf16 MXU operands (x, weights, intermediate h) + f32 accumulation vs pure-f32 reference.
    assert jnp.allclose(out, ref, rtol=2e-2, atol=2e-2), "mismatch vs pure-JAX reference"

    print("KERNEL_OK")
</pallas_src>

<mosaic_0001>
module attributes {stable_mosaic.version = 11 : i64} {
  func.func @_llama_mlp_kernel(%arg0: i32, %arg1: memref<16x128xbf16, #tpu.memory_space<vmem>>, %arg2: memref<128x512xbf16, #tpu.memory_space<vmem>>, %arg3: memref<256x128xbf16, #tpu.memory_space<vmem>>, %arg4: memref<16x128xf32, #tpu.memory_space<vmem>>) attributes {dimension_semantics = [#tpu.dimension_semantics<parallel>], iteration_bounds = array<i64: 1>, scalar_prefetch = 0 : i64, scratch_operands = 0 : i64, tpu.core_type = #tpu.core_type<tc>, window_params = [{transform_indices = @transform_0, window_bounds = array<i64: 16, 128>}, {pipeline_mode = #tpu.pipeline_mode<synchronous>, transform_indices = @transform_1, window_bounds = array<i64: 128, 512>}, {pipeline_mode = #tpu.pipeline_mode<synchronous>, transform_indices = @transform_2, window_bounds = array<i64: 256, 128>}, {transform_indices = @transform_3, window_bounds = array<i64: 16, 128>}]} {
    %c0 = arith.constant 0 : index
    %c0_0 = arith.constant 0 : index
    %0 = vector.load %arg1[%c0, %c0_0] : memref<16x128xbf16, #tpu.memory_space<vmem>>, vector<16x128xbf16>
    %c0_1 = arith.constant 0 : index
    %c0_2 = arith.constant 0 : index
    %1 = vector.load %arg2[%c0_1, %c0_2] : memref<128x512xbf16, #tpu.memory_space<vmem>>, vector<128x512xbf16>
    %cst = arith.constant dense<0.000000e+00> : vector<16x512xf32>
    %2 = tpu.matmul %0, %1, %cst {dimension_numbers = #tpu.dot_dimension_numbers<[1], [0], [0], [1], [0, 0, 1, 1], [], []>} : vector<16x128xbf16>, vector<128x512xbf16>, vector<16x512xf32> -> vector<16x512xf32>
    %3 = vector.extract_strided_slice %2 {offsets = [0, 0], sizes = [16, 256], strides = [1, 1]} : vector<16x512xf32> to vector<16x256xf32>
    %4 = vector.extract_strided_slice %2 {offsets = [0, 256], sizes = [16, 256], strides = [1, 1]} : vector<16x512xf32> to vector<16x256xf32>
    %5 = arith.negf %3 : vector<16x256xf32>
    %6 = math.exp %5 : vector<16x256xf32>
    %cst_3 = arith.constant 1.000000e+00 : f32
    %7 = vector.broadcast %cst_3 : f32 to vector<16x256xf32>
    %8 = arith.addf %7, %6 : vector<16x256xf32>
    %9 = arith.divf %7, %8 : vector<16x256xf32>
    %10 = arith.mulf %3, %9 : vector<16x256xf32>
    %11 = arith.mulf %10, %4 : vector<16x256xf32>
    %12 = arith.truncf %11 : vector<16x256xf32> to vector<16x256xbf16>
    %c0_4 = arith.constant 0 : index
    %c0_5 = arith.constant 0 : index
    %13 = vector.load %arg3[%c0_4, %c0_5] : memref<256x128xbf16, #tpu.memory_space<vmem>>, vector<256x128xbf16>
    %cst_6 = arith.constant dense<0.000000e+00> : vector<16x128xf32>
    %14 = tpu.matmul %12, %13, %cst_6 {dimension_numbers = #tpu.dot_dimension_numbers<[1], [0], [0], [1], [0, 0, 1, 1], [], []>} : vector<16x256xbf16>, vector<256x128xbf16>, vector<16x128xf32> -> vector<16x128xf32>
    %c0_7 = arith.constant 0 : index
    %c0_8 = arith.constant 0 : index
    %15 = vector.load %arg4[%c0_7, %c0_8] : memref<16x128xf32, #tpu.memory_space<vmem>>, vector<16x128xf32>
    tpu.vector_store %arg4[%c0_7, %c0_8], %14 {strides = array<i32>} : memref<16x128xf32, #tpu.memory_space<vmem>>, vector<16x128xf32>,
    return
  }
  func.func @transform_0(%arg0: i32) -> (i32, i32) {
    %c0_i32 = arith.constant 0 : i32
    %c0_i32_0 = arith.constant 0 : i32
    return %arg0, %c0_i32 : i32, i32
  }
  func.func @transform_1(%arg0: i32) -> (i32, i32) {
    %c0_i32 = arith.constant 0 : i32
    %c0_i32_0 = arith.constant 0 : i32
    %c0_i32_1 = arith.constant 0 : i32
    return %c0_i32, %c0_i32_0 : i32, i32
  }
  func.func @transform_2(%arg0: i32) -> (i32, i32) {
    %c0_i32 = arith.constant 0 : i32
    %c0_i32_0 = arith.constant 0 : i32
    %c0_i32_1 = arith.constant 0 : i32
    return %c0_i32, %c0_i32_0 : i32, i32
  }
  func.func @transform_3(%arg0: i32) -> (i32, i32) {
    %c0_i32 = arith.constant 0 : i32
    %c0_i32_0 = arith.constant 0 : i32
    return %arg0, %c0_i32 : i32, i32
  }
}

</mosaic_0001>

<llo_original>
// kernel: llama_parallel_mlp.1
$region0: #{llama_parallel_mlp.1}
  #allocation0 [shape = 'u32[]', space=smem, size = 0x4, offset = 0x4, fixed_abs, tag = 'smem constant byte address 0x4 - core index']
  #allocation1 [shape = 'u32[144,128]{1,0:T(1,128)}', space=vmem, size = 0x12000, scoped, tag = 'internal scratch']
  %s0 = inlined_call_operand.vmem [shape: bf16[16,128], index: 0, kind: input, shape index: {}]
  %s1 = inlined_call_operand.hbm [shape: bf16[128,512], index: 1, kind: input, shape index: {}]
  %s2 = inlined_call_operand.hbm [shape: bf16[256,128], index: 2, kind: input, shape index: {}]
  %s3 = inlined_call_operand.hbm [shape: f32[16,128], index: 3, kind: output, shape index: {}]
  %s4 = sld [smem:[#allocation0]]
  $region30: #{llama_parallel_mlp.1} parent=0
    _
  %s6 = ssub.s32 1, %s4
  %s7 = scalar_select 0, %s6, %s4
  $region1: #{llama_parallel_mlp.1} parent=0
    #allocation2 [shape = 'u8[131072]{0}', space=vmem, size = 0x20000, scoped, tag = 'input window, operand 1, single buffered']
    #allocation3 [shape = 's32[1]{0}', space=sflag, size = 0x4, scoped, tag = 'scoped memory for llama_parallel_mlp.1']
    #allocation4 [shape = 's32[1]{0}', space=sflag, size = 0x4, scoped, tag = 'scoped memory for llama_parallel_mlp.1']
    #allocation5 [shape = 'u8[65536]{0}', space=vmem, size = 0x10000, scoped, tag = 'input window, operand 2, single buffered']
    #allocation6 [shape = 's32[1]{0}', space=sflag, size = 0x4, scoped, tag = 'scoped memory for llama_parallel_mlp.1']
    #allocation7 [shape = 'u8[8192]{0}', space=vmem, size = 0x2000, scoped, tag = 'output window, operand 0, single buffered']
    %8 = vsyncpa [#allocation3], 0
    %9 = vsyncpa [#allocation6], 0
    %10 = vsyncpa [#allocation4], 0
    // Predicated region
    $region2: #{llama_parallel_mlp.1} parent=1 // pred_check
      _
    $region3: #{llama_parallel_mlp.1} parent=1 // pred_check_branch
      %12 = sbr.rel (0) target = $region5
    $region4: #{llama_parallel_mlp.1} parent=1 // pred_region
      _
    $region5: #{llama_parallel_mlp.1} parent=1 // pred_fallthru
      _
    // Predicated region
    $region6: #{llama_parallel_mlp.1} parent=1 // pred_check
      _
    $region7: #{llama_parallel_mlp.1} parent=1 // pred_check_branch
      %14 = sbr.rel (0) target = $region9
    $region8: #{llama_parallel_mlp.1} parent=1 // pred_region
      %s16 = ssub.s32 4096, 4096
      %17 = vsyncadd [#allocation3], %s16
      %s18 = sshll.u32 [#allocation2], 4
      %s19 = int_to_ptr.vmem [resolvable:$true] %s18
      %24 = dma.hbm_to_vmem [thread:$0]  %s1, 4096, %s19, [#allocation3], 256, 256, 16
    $region9: #{llama_parallel_mlp.1} parent=1 // pred_fallthru
      _
    // Predicated region
    $region10: #{llama_parallel_mlp.1} parent=1 // pred_check
      _
    $region11: #{llama_parallel_mlp.1} parent=1 // pred_check_branch
      %26 = sbr.rel (0) target = $region13
    $region12: #{llama_parallel_mlp.1} parent=1 // pred_region
      %s28 = ssub.s32 2048, 2048
      %29 = vsyncadd [#allocation6], %s28
      %s30 = sshll.u32 [#allocation5], 4
      %s31 = int_to_ptr.vmem [resolvable:$true] %s30
      %36 = dma.hbm_to_vmem [thread:$0]  %s2, 2048, %s31, [#allocation6], 64, 64, 4
    $region13: #{llama_parallel_mlp.1} parent=1 // pred_fallthru
      _
    // Predicated region
    $region14: #{llama_parallel_mlp.1} parent=1 // pred_check
      _
    $region15: #{llama_parallel_mlp.1} parent=1 // pred_check_branch
      %38 = sbr.rel (0) target = $region17
    $region16: #{llama_parallel_mlp.1} parent=1 // pred_region
      %39 = dma.done [#allocation3], 4096
    $region17: #{llama_parallel_mlp.1} parent=1 // pred_fallthru
      _
    // Predicated region
    $region18: #{llama_parallel_mlp.1} parent=1 // pred_check
      _
    $region19: #{llama_parallel_mlp.1} parent=1 // pred_check_branch
      %41 = sbr.rel (0) target = $region21
    $region20: #{llama_parallel_mlp.1} parent=1 // pred_region
      %42 = dma.done [#allocation6], 2048
    $region21: #{llama_parallel_mlp.1} parent=1 // pred_fallthru
      _
    %v44 = vld [vmem:[%s0] sm:$0xf]
    %v45 = vld [vmem:[%s0 + $0x4] sm:$0xf]
    %v46 = vld [vmem:[#allocation2] sm:$0xff]
    %v47 = vld [vmem:[#allocation2 + $0x8] sm:$0xff]
    %v48 = vld [vmem:[#allocation2 + $0x10] sm:$0xff]
    %v49 = vld [vmem:[#allocation2 + $0x18] sm:$0xff]
    %v50 = vld [vmem:[#allocation2 + $0x20] sm:$0xff]
    %v51 = vld [vmem:[#allocation2 + $0x28] sm:$0xff]
    %v52 = vld [vmem:[#allocation2 + $0x30] sm:$0xff]
    %v53 = vld [vmem:[#allocation2 + $0x38] sm:$0xff]
    %v54 = vld [vmem:[#allocation2 + $0x40] sm:$0xff]
    %v55 = vld [vmem:[#allocation2 + $0x48] sm:$0xff]
    %v56 = vld [vmem:[#allocation2 + $0x50] sm:$0xff]
    %v57 = vld [vmem:[#allocation2 + $0x58] sm:$0xff]
    %v58 = vld [vmem:[#allocation2 + $0x60] sm:$0xff]
    %v59 = vld [vmem:[#allocation2 + $0x68] sm:$0xff]
    %v60 = vld [vmem:[#allocation2 + $0x70] sm:$0xff]
    %v61 = vld [vmem:[#allocation2 + $0x78] sm:$0xff]
    %v62 = vld [vmem:[#allocation2 + $0x80] sm:$0xff]
    %v63 = vld [vmem:[#allocation2 + $0x88] sm:$0xff]
    %v64 = vld [vmem:[#allocation2 + $0x90] sm:$0xff]
    %v65 = vld [vmem:[#allocation2 + $0x98] sm:$0xff]
    %v66 = vld [vmem:[#allocation2 + $0xa0] sm:$0xff]
    %v67 = vld [vmem:[#allocation2 + $0xa8] sm:$0xff]
    %v68 = vld [vmem:[#allocation2 + $0xb0] sm:$0xff]
    %v69 = vld [vmem:[#allocation2 + $0xb8] sm:$0xff]
    %v70 = vld [vmem:[#allocation2 + $0xc0] sm:$0xff]
    %v71 = vld [vmem:[#allocation2 + $0xc8] sm:$0xff]
    %v72 = vld [vmem:[#allocation2 + $0xd0] sm:$0xff]
    %v73 = vld [vmem:[#allocation2 + $0xd8] sm:$0xff]
    %v74 = vld [vmem:[#allocation2 + $0xe0] sm:$0xff]
    %v75 = vld [vmem:[#allocation2 + $0xe8] sm:$0xff]
    %v76 = vld [vmem:[#allocation2 + $0xf0] sm:$0xff]
    %v77 = vld [vmem:[#allocation2 + $0xf8] sm:$0xff]
    %v80 = vunpack.c.l.b16 %v44
    %v81 = vunpack.c.l.b16 %v45
    %v82 = vpack.c.b16 %v81, %v80
    %v116 = vunpack.c.l.b16 %v46
    %v117 = vunpack.c.h.b16 %v46
    %v118 = vunpack.c.l.b16 %v47
    %v119 = vunpack.c.h.b16 %v47
    %v120 = vunpack.c.l.b16 %v48
    %v121 = vunpack.c.h.b16 %v48
    %v122 = vunpack.c.l.b16 %v49
    %v123 = vunpack.c.h.b16 %v49
    %v124 = vunpack.c.l.b16 %v50
    %v125 = vunpack.c.h.b16 %v50
    %v126 = vunpack.c.l.b16 %v51
    %v127 = vunpack.c.h.b16 %v51
    %v128 = vunpack.c.l.b16 %v52
    %v129 = vunpack.c.h.b16 %v52
    %v130 = vunpack.c.l.b16 %v53
    %v131 = vunpack.c.h.b16 %v53
    %v132 = vunpack.c.l.b16 %v54
    %v133 = vunpack.c.h.b16 %v54
    %v134 = vunpack.c.l.b16 %v55
    %v135 = vunpack.c.h.b16 %v55
    %v136 = vunpack.c.l.b16 %v56
    %v137 = vunpack.c.h.b16 %v56
    %v138 = vunpack.c.l.b16 %v57
    %v139 = vunpack.c.h.b16 %v57
    %v140 = vunpack.c.l.b16 %v58
    %v141 = vunpack.c.h.b16 %v58
    %v142 = vunpack.c.l.b16 %v59
    %v143 = vunpack.c.h.b16 %v59
    %v144 = vunpack.c.l.b16 %v60
    %v145 = vunpack.c.h.b16 %v60
    %v146 = vunpack.c.l.b16 %v61
    %v147 = vunpack.c.h.b16 %v61
    %v148 = vunpack.c.l.b16 %v62
    %v149 = vunpack.c.h.b16 %v62
    %v150 = vunpack.c.l.b16 %v63
    %v151 = vunpack.c.h.b16 %v63
    %v152 = vunpack.c.l.b16 %v64
    %v153 = vunpack.c.h.b16 %v64
    %v154 = vunpack.c.l.b16 %v65
    %v155 = vunpack.c.h.b16 %v65
    %v156 = vunpack.c.l.b16 %v66
    %v157 = vunpack.c.h.b16 %v66
    %v158 = vunpack.c.l.b16 %v67
    %v159 = vunpack.c.h.b16 %v67
    %v160 = vunpack.c.l.b16 %v68
    %v161 = vunpack.c.h.b16 %v68
    %v162 = vunpack.c.l.b16 %v69
    %v163 = vunpack.c.h.b16 %v69
    %v164 = vunpack.c.l.b16 %v70
    %v165 = vunpack.c.h.b16 %v70
    %v166 = vunpack.c.l.b16 %v71
    %v167 = vunpack.c.h.b16 %v71
    %v168 = vunpack.c.l.b16 %v72
    %v169 = vunpack.c.h.b16 %v72
    %v170 = vunpack.c.l.b16 %v73
    %v171 = vunpack.c.h.b16 %v73
    %v172 = vunpack.c.l.b16 %v74
    %v173 = vunpack.c.h.b16 %v74
    %v174 = vunpack.c.l.b16 %v75
    %v175 = vunpack.c.h.b16 %v75
    %v176 = vunpack.c.l.b16 %v76
    %v177 = vunpack.c.h.b16 %v76
    %v178 = vunpack.c.l.b16 %v77
    %v179 = vunpack.c.h.b16 %v77
    %v180 = vpack.c.b16 %v120, %v116
    %v181 = vpack.c.b16 %v121, %v117
    %v182 = vpack.c.b16 %v122, %v118
    %v183 = vpack.c.b16 %v123, %v119
    %v184 = vpack.c.b16 %v128, %v124
    %v185 = vpack.c.b16 %v129, %v125
    %v186 = vpack.c.b16 %v130, %v126
    %v187 = vpack.c.b16 %v131, %v127
    %v188 = vpack.c.b16 %v136, %v132
    %v189 = vpack.c.b16 %v137, %v133
    %v190 = vpack.c.b16 %v138, %v134
    %v191 = vpack.c.b16 %v139, %v135
    %v192 = vpack.c.b16 %v144, %v140
    %v193 = vpack.c.b16 %v145, %v141
    %v194 = vpack.c.b16 %v146, %v142
    %v195 = vpack.c.b16 %v147, %v143
    %v196 = vpack.c.b16 %v152, %v148
    %v197 = vpack.c.b16 %v153, %v149
    %v198 = vpack.c.b16 %v154, %v150
    %v199 = vpack.c.b16 %v155, %v151
    %v200 = vpack.c.b16 %v160, %v156
    %v201 = vpack.c.b16 %v161, %v157
    %v202 = vpack.c.b16 %v162, %v158
    %v203 = vpack.c.b16 %v163, %v159
    %v204 = vpack.c.b16 %v168, %v164
    %v205 = vpack.c.b16 %v169, %v165
    %v206 = vpack.c.b16 %v170, %v166
    %v207 = vpack.c.b16 %v171, %v167
    %v208 = vpack.c.b16 %v176, %v172
    %v209 = vpack.c.b16 %v177, %v173
    %v210 = vpack.c.b16 %v178, %v174
    %v211 = vpack.c.b16 %v179, %v175
    %244 = vmatprep.subr.bf16.mxu0 %v209
    %245 = vmatpush1.bf16.msra.mxu0 %v208
    %246 = vmatprep.subr.bf16.mxu0 %v205
    %247 = vmatpush1.bf16.msra.mxu0 %v204
    %248 = vmatprep.subr.bf16.mxu0 %v201
    %249 = vmatpush1.bf16.msra.mxu0 %v200
    %250 = vmatprep.subr.bf16.mxu0 %v197
    %251 = vmatpush1.bf16.msra.mxu0 %v196
    %252 = vmatprep.subr.bf16.mxu0 %v193
    %253 = vmatpush1.bf16.msra.mxu0 %v192
    %254 = vmatprep.subr.bf16.mxu0 %v189
    %255 = vmatpush1.bf16.msra.mxu0 %v188
    %256 = vmatprep.subr.bf16.mxu0 %v185
    %257 = vmatpush1.bf16.msra.mxu0 %v184
    %258 = vmatprep.subr.bf16.mxu0 %v181
    %259 = vmatpush1.bf16.msra.mxu0 %v180
    %260 = vmatprep.subr.bf16.mxu0 0
    %261 = vmatpush2.bf16.msra.mxu0 0
    %262 = vmatprep.subr.bf16.mxu0 0
    %263 = vmatpush2.bf16.msra.mxu0 0
    %264 = vmatprep.subr.bf16.mxu0 0
    %265 = vmatpush2.bf16.msra.mxu0 0
    %266 = vmatprep.subr.bf16.mxu0 0
    %267 = vmatpush2.bf16.msra.mxu0 0
    %268 = vmatprep.subr.bf16.mxu0 0
    %269 = vmatpush2.bf16.msra.mxu0 0
    %270 = vmatprep.subr.bf16.mxu0 0
    %271 = vmatpush2.bf16.msra.mxu0 0
    %272 = vmatprep.subr.bf16.mxu0 0
    %273 = vmatpush2.bf16.msra.mxu0 0
    %274 = vmatprep.subr.bf16.mxu0 0
    %275 = vmatpush2.bf16.msra.mxu0 0
    %276 = vmatprep.mubr.bf16.mxu0 0
    %277 = vmatmul.mubr.bf16.gmra.mxu0 %v82
    %v278 = vpop.f32.mrf.mxu0
    %v279 = vadd.f32 0.0, %v278
    %v280 = vpop.f32.mrf.mxu0
    %v281 = vadd.f32 0.0, %v280
    %v282 = vpop.f32.mrf.mxu0
    %v283 = vadd.f32 0.0, %v282
    %v284 = vpop.f32.mrf.mxu0
    %v285 = vadd.f32 0.0, %v284
    %286 = vdwg.mxu0
    %287 = vmatprep.subr.bf16.mxu0 %v211
    %288 = vmatpush1.bf16.msra.mxu0 %v210
    %289 = vmatprep.subr.bf16.mxu0 %v207
    %290 = vmatpush1.bf16.msra.mxu0 %v206
    %291 = vmatprep.subr.bf16.mxu0 %v203
    %292 = vmatpush1.bf16.msra.mxu0 %v202
    %293 = vmatprep.subr.bf16.mxu0 %v199
    %294 = vmatpush1.bf16.msra.mxu0 %v198
    %295 = vmatprep.subr.bf16.mxu0 %v195
    %296 = vmatpush1.bf16.msra.mxu0 %v194
    %297 = vmatprep.subr.bf16.mxu0 %v191
    %298 = vmatpush1.bf16.msra.mxu0 %v190
    %299 = vmatprep.subr.bf16.mxu0 %v187
    %300 = vmatpush1.bf16.msra.mxu0 %v186
    %301 = vmatprep.subr.bf16.mxu0 %v183
    %302 = vmatpush1.bf16.msra.mxu0 %v182
    %303 = vmatprep.subr.bf16.mxu0 0
    %304 = vmatpush2.bf16.msra.mxu0 0
    %305 = vmatprep.subr.bf16.mxu0 0
    %306 = vmatpush2.bf16.msra.mxu0 0
    %307 = vmatprep.subr.bf16.mxu0 0
    %308 = vmatpush2.bf16.msra.mxu0 0
    %309 = vmatprep.subr.bf16.mxu0 0
    %310 = vmatpush2.bf16.msra.mxu0 0
    %311 = vmatprep.subr.bf16.mxu0 0
    %312 = vmatpush2.bf16.msra.mxu0 0
    %313 = vmatprep.subr.bf16.mxu0 0
    %314 = vmatpush2.bf16.msra.mxu0 0
    %315 = vmatprep.subr.bf16.mxu0 0
    %316 = vmatpush2.bf16.msra.mxu0 0
    %317 = vmatprep.subr.bf16.mxu0 0
    %318 = vmatpush2.bf16.msra.mxu0 0
    %319 = vmatprep.mubr.bf16.mxu0 0
    %320 = vmatmul.mubr.bf16.gmra.mxu0 %v82
    %v321 = vpop.f32.mrf.mxu0
    %v322 = vadd.f32 0.0, %v321
    %v323 = vpop.f32.mrf.mxu0
    %v324 = vadd.f32 0.0, %v323
    %v325 = vpop.f32.mrf.mxu0
    %v326 = vadd.f32 0.0, %v325
    %v327 = vpop.f32.mrf.mxu0
    %v328 = vadd.f32 0.0, %v327
    %329 = vdwg.mxu0
    %v330 = vxor.u32 %v279, 2147483648
    %v331 = vxor.u32 %v281, 2147483648
    %v332 = vxor.u32 %v283, 2147483648
    %v333 = vxor.u32 %v285, 2147483648
    %v334 = vmul.f32 %v330, 1.442695
    %v335 = vpow.pop %v334
    %v336 = vmul.f32 %v331, 1.442695
    %v337 = vpow.pop %v336
    %v338 = vmul.f32 %v332, 1.442695
    %v339 = vpow.pop %v338
    %v340 = vmul.f32 %v333, 1.442695
    %v341 = vpow.pop %v340
    %v342 = vadd.f32 %v335, 1.0
    %v343 = vadd.f32 %v337, 1.0
    %v344 = vadd.f32 %v339, 1.0
    %v345 = vadd.f32 %v341, 1.0
    %v346 = vrcp.pop %v342
    %v347 = vmul.f32 1.0, %v346
    %v348 = vrcp.pop %v343
    %v349 = vmul.f32 1.0, %v348
    %v350 = vrcp.pop %v344
    %v351 = vmul.f32 1.0, %v350
    %v352 = vrcp.pop %v345
    %v353 = vmul.f32 1.0, %v352
    %v354 = vmul.f32 %v279, %v347
    %v355 = vmul.f32 %v281, %v349
    %v356 = vmul.f32 %v283, %v351
    %v357 = vmul.f32 %v285, %v353
    %v358 = vmul.f32 %v354, %v322
    %v359 = vmul.f32 %v355, %v324
    %v360 = vmul.f32 %v356, %v326
    %v361 = vmul.f32 %v357, %v328
    %v362 = vpack.c.bf16 %v360, %v358
    %v363 = vpack.c.bf16 %v361, %v359
    %v364 = vld [vmem:[#allocation5] sm:$0xf]
    %v365 = vld [vmem:[#allocation5 + $0x4] sm:$0xf]
    %v366 = vld [vmem:[#allocation5 + $0x8] sm:$0xf]
    %v367 = vld [vmem:[#allocation5 + $0xc] sm:$0xf]
    %v368 = vld [vmem:[#allocation5 + $0x10] sm:$0xf]
    %v369 = vld [vmem:[#allocation5 + $0x14] sm:$0xf]
    %v370 = vld [vmem:[#allocation5 + $0x18] sm:$0xf]
    %v371 = vld [vmem:[#allocation5 + $0x1c] sm:$0xf]
    %v372 = vld [vmem:[#allocation5 + $0x20] sm:$0xf]
    %v373 = vld [vmem:[#allocation5 + $0x24] sm:$0xf]
    %v374 = vld [vmem:[#allocation5 + $0x28] sm:$0xf]
    %v375 = vld [vmem:[#allocation5 + $0x2c] sm:$0xf]
    %v376 = vld [vmem:[#allocation5 + $0x30] sm:$0xf]
    %v377 = vld [vmem:[#allocation5 + $0x34] sm:$0xf]
    %v378 = vld [vmem:[#allocation5 + $0x38] sm:$0xf]
    %v379 = vld [vmem:[#allocation5 + $0x3c] sm:$0xf]
    %v380 = vld [vmem:[#allocation5 + $0x40] sm:$0xf]
    %v381 = vld [vmem:[#allocation5 + $0x44] sm:$0xf]
    %v382 = vld [vmem:[#allocation5 + $0x48] sm:$0xf]
    %v383 = vld [vmem:[#allocation5 + $0x4c] sm:$0xf]
    %v384 = vld [vmem:[#allocation5 + $0x50] sm:$0xf]
    %v385 = vld [vmem:[#allocation5 + $0x54] sm:$0xf]
    %v386 = vld [vmem:[#allocation5 + $0x58] sm:$0xf]
    %v387 = vld [vmem:[#allocation5 + $0x5c] sm:$0xf]
    %v388 = vld [vmem:[#allocation5 + $0x60] sm:$0xf]
    %v389 = vld [vmem:[#allocation5 + $0x64] sm:$0xf]
    %v390 = vld [vmem:[#allocation5 + $0x68] sm:$0xf]
    %v391 = vld [vmem:[#allocation5 + $0x6c] sm:$0xf]
    %v392 = vld [vmem:[#allocation5 + $0x70] sm:$0xf]
    %v393 = vld [vmem:[#allocation5 + $0x74] sm:$0xf]
    %v394 = vld [vmem:[#allocation5 + $0x78] sm:$0xf]
    %v395 = vld [vmem:[#allocation5 + $0x7c] sm:$0xf]
    %v428 = vunpack.c.l.b16 %v364
    %v429 = vunpack.c.l.b16 %v365
    %v430 = vunpack.c.l.b16 %v366
    %v431 = vunpack.c.l.b16 %v367
    %v432 = vunpack.c.l.b16 %v368
    %v433 = vunpack.c.l.b16 %v369
    %v434 = vunpack.c.l.b16 %v370
    %v435 = vunpack.c.l.b16 %v371
    %v436 = vunpack.c.l.b16 %v372
    %v437 = vunpack.c.l.b16 %v373
    %v438 = vunpack.c.l.b16 %v374
    %v439 = vunpack.c.l.b16 %v375
    %v440 = vunpack.c.l.b16 %v376
    %v441 = vunpack.c.l.b16 %v377
    %v442 = vunpack.c.l.b16 %v378
    %v443 = vunpack.c.l.b16 %v379
    %v444 = vunpack.c.l.b16 %v380
    %v445 = vunpack.c.l.b16 %v381
    %v446 = vunpack.c.l.b16 %v382
    %v447 = vunpack.c.l.b16 %v383
    %v448 = vunpack.c.l.b16 %v384
    %v449 = vunpack.c.l.b16 %v385
    %v450 = vunpack.c.l.b16 %v386
    %v451 = vunpack.c.l.b16 %v387
    %v452 = vunpack.c.l.b16 %v388
    %v453 = vunpack.c.l.b16 %v389
    %v454 = vunpack.c.l.b16 %v390
    %v455 = vunpack.c.l.b16 %v391
    %v456 = vunpack.c.l.b16 %v392
    %v457 = vunpack.c.l.b16 %v393
    %v458 = vunpack.c.l.b16 %v394
    %v459 = vunpack.c.l.b16 %v395
    %v460 = vpack.c.b16 %v429, %v428
    %v461 = vpack.c.b16 %v431, %v430
    %v462 = vpack.c.b16 %v433, %v432
    %v463 = vpack.c.b16 %v435, %v434
    %v464 = vpack.c.b16 %v437, %v436
    %v465 = vpack.c.b16 %v439, %v438
    %v466 = vpack.c.b16 %v441, %v440
    %v467 = vpack.c.b16 %v443, %v442
    %v468 = vpack.c.b16 %v445, %v444
    %v469 = vpack.c.b16 %v447, %v446
    %v470 = vpack.c.b16 %v449, %v448
    %v471 = vpack.c.b16 %v451, %v450
    %v472 = vpack.c.b16 %v453, %v452
    %v473 = vpack.c.b16 %v455, %v454
    %v474 = vpack.c.b16 %v457, %v456
    %v475 = vpack.c.b16 %v459, %v458
    %492 = vmatprep.subr.bf16.mxu0 0
    %493 = vmatpush1.bf16.msra.mxu0 %v467
    %494 = vmatprep.subr.bf16.mxu0 0
    %495 = vmatpush1.bf16.msra.mxu0 %v466
    %496 = vmatprep.subr.bf16.mxu0 0
    %497 = vmatpush1.bf16.msra.mxu0 %v465
    %498 = vmatprep.subr.bf16.mxu0 0
    %499 = vmatpush1.bf16.msra.mxu0 %v464
    %500 = vmatprep.subr.bf16.mxu0 0
    %501 = vmatpush1.bf16.msra.mxu0 %v463
    %502 = vmatprep.subr.bf16.mxu0 0
    %503 = vmatpush1.bf16.msra.mxu0 %v462
    %504 = vmatprep.subr.bf16.mxu0 0
    %505 = vmatpush1.bf16.msra.mxu0 %v461
    %506 = vmatprep.subr.bf16.mxu0 0
    %507 = vmatpush1.bf16.msra.mxu0 %v460
    %508 = vmatprep.subr.bf16.mxu0 0
    %509 = vmatpush2.bf16.msra.mxu0 %v475
    %510 = vmatprep.subr.bf16.mxu0 0
    %511 = vmatpush2.bf16.msra.mxu0 %v474
    %512 = vmatprep.subr.bf16.mxu0 0
    %513 = vmatpush2.bf16.msra.mxu0 %v473
    %514 = vmatprep.subr.bf16.mxu0 0
    %515 = vmatpush2.bf16.msra.mxu0 %v472
    %516 = vmatprep.subr.bf16.mxu0 0
    %517 = vmatpush2.bf16.msra.mxu0 %v471
    %518 = vmatprep.subr.bf16.mxu0 0
    %519 = vmatpush2.bf16.msra.mxu0 %v470
    %520 = vmatprep.subr.bf16.mxu0 0
    %521 = vmatpush2.bf16.msra.mxu0 %v469
    %522 = vmatprep.subr.bf16.mxu0 0
    %523 = vmatpush2.bf16.msra.mxu0 %v468
    %524 = vmatprep.mubr.bf16.mxu0 %v363
    %525 = vmatmul.mubr.bf16.gmra.mxu0 %v362
    %v526 = vpop.f32.mrf.mxu0
    %v527 = vadd.f32 0.0, %v526
    %v528 = vpop.f32.mrf.mxu0
    %v529 = vpop.f32.mrf.mxu0
    %v530 = vadd.f32 0.0, %v529
    %v531 = vpop.f32.mrf.mxu0
    %532 = vdwg.mxu0
    %533 = vst [vmem:[#allocation7] sm:$0xff] %v527
    %534 = vst [vmem:[#allocation7 + $0x8] sm:$0xff] %v530
    // Predicated region
    $region22: #{llama_parallel_mlp.1} parent=1 // pred_check
      _
    $region23: #{llama_parallel_mlp.1} parent=1 // pred_check_branch
      %536 = sbr.rel (0) target = $region25
    $region24: #{llama_parallel_mlp.1} parent=1 // pred_region
      %s538 = ssub.s32 256, 256
      %539 = vsyncadd [#allocation4], %s538
      %s540 = sshll.u32 [#allocation7], 4
      %s541 = int_to_ptr.vmem [resolvable:$true] %s540
      %546 = dma.vmem_to_hbm [thread:$0]  %s541, 256, %s3, [#allocation4], 128, 128, 8
    $region25: #{llama_parallel_mlp.1} parent=1 // pred_fallthru
      _
    // Predicated region
    $region26: #{llama_parallel_mlp.1} parent=1 // pred_check
      _
    $region27: #{llama_parallel_mlp.1} parent=1 // pred_check_branch
      %548 = sbr.rel (0) target = $region29
    $region28: #{llama_parallel_mlp.1} parent=1 // pred_region
      %549 = dma.done [#allocation4], 256
    $region29: #{llama_parallel_mlp.1} parent=1 // pred_fallthru
      _
    %550 = vsyncpa [#allocation3], 1
    %551 = vsyncpa [#allocation6], 1
    %552 = vsyncpa [#allocation4], 1

</llo_original>
